<compile_context>
chip_gen: v7x
topology: tpu7x:2x2x1
jax: 0.10.0
libtpu: 0.0.40
codegen_flags: <defaults>
</compile_context>

<pallas_src>
import functools

import jax
import jax.numpy as jnp
from jax.experimental import pallas as pl
from jax.experimental.pallas import tpu as pltpu


def _indrnn_kernel(x_ref, whh_ref, h0_ref, out_ref, h_scratch,
                   *, t_chunk, unroll, carry_in_vregs):
    t_blk = pl.program_id(1)  # time-chunk index (innermost, "arbitrary")

    @pl.when(t_blk == 0)
    def _():
        # (Re)initialize the carried hidden state at the start of every
        # batch block's time sweep.
        h_scratch[...] = h0_ref[...].astype(h_scratch.dtype)

    # Hoist the weight load once per chunk. It is already tiled to the full
    # lane width (B_tile*H) in the wrapper, so the inner body is exactly one
    # vmul + one vadd + one max per vreg (no broadcast, no zero vreg).
    w = whh_ref[...].astype(jnp.float32)          # (1, BH_tile)

    if carry_in_vregs:
        # Keep h in registers within the chunk; touch h_scratch only at the
        # chunk boundaries (saves one vld + one vst per timestep).
        def step(i, h):
            x_t = x_ref[pl.ds(i, 1), :].astype(jnp.float32)   # (1, BH_tile)
            h = jnp.maximum(x_t + w * h, 0.0)                  # relu
            out_ref[pl.ds(i, 1), :] = h.astype(out_ref.dtype)
            return h

        h_final = jax.lax.fori_loop(0, t_chunk, step, h_scratch[...],
                                    unroll=unroll)
        h_scratch[...] = h_final                   # carry across time chunks
    else:
        # Large-state fallback: round-trip h through VMEM every step instead
        # of blowing the 64-vreg file.
        def step(i, carry):
            x_t = x_ref[pl.ds(i, 1), :].astype(jnp.float32)
            h = jnp.maximum(x_t + w * h_scratch[...], 0.0)
            h_scratch[...] = h
            out_ref[pl.ds(i, 1), :] = h.astype(out_ref.dtype)
            return carry

        jax.lax.fori_loop(0, t_chunk, step, 0, unroll=unroll)


def indrnn_pallas(x, weight_hh, h0=None, *, t_chunk=None, b_blocks=1):
    """IndRNN forward.  x: (T, B, H), weight_hh: (H,), h0: (B, H) or None.

    b_blocks > 1 shards the batch across TensorCores via a "parallel" grid
    axis (useful on v7x's 2 TCs); it is only honored when B divides evenly
    and each batch block stays lane-dense ((B/b_blocks)*H % 128 == 0).
    """
    T, B, H = x.shape
    if h0 is None:
        h0 = jnp.zeros((B, H), dtype=x.dtype)

    BH = B * H

    # --- optional batch-block parallelism (v7x megacore); safe fallback.
    if b_blocks > 1:
        if B % b_blocks != 0 or ((B // b_blocks) * H) % 128 != 0:
            b_blocks = 1
    bh_tile = BH // b_blocks

    # --- pick a time chunk so double-buffered x + out blocks stay well under
    # every generation's scoped-VMEM limit (v5e 16 MiB default, v7x 64 MiB
    # physical): 2 buffers x (x + out) x chunk_bytes <= ~8 MiB.
    if t_chunk is None:
        bytes_per_row = bh_tile * x.dtype.itemsize
        budget = 8 * 1024 * 1024
        t_chunk = max(1, budget // (4 * bytes_per_row))
        t_chunk = min(t_chunk, 512)
    if t_chunk >= T:
        t_chunk = T                                # single chunk (full extent)
    else:
        t_chunk = max(8, (t_chunk // 8) * 8)       # keep sublane-aligned blocks

    # Pad T to a multiple of t_chunk so the grid divides evenly. Padded
    # timesteps are zeros; their h is never read by a later chunk and the
    # padded output rows are sliced off below.
    n_chunks = -(-T // t_chunk)
    T_pad = n_chunks * t_chunk

    # Flatten (B, H) -> lane-dense B*H last dim; the recurrence is elementwise
    # per (b, h) channel so this is exact.
    x_flat = x.reshape(T, BH)
    if T_pad != T:
        x_flat = jnp.pad(x_flat, ((0, T_pad - T), (0, 0)))
    whh_flat = jnp.tile(weight_hh.astype(jnp.float32), B).reshape(1, BH)
    h0_flat = h0.reshape(1, BH)

    unroll = True if t_chunk <= 128 else 8
    carry_in_vregs = bh_tile <= 16 * 1024          # ~1/4 of the vreg file (f32)

    kernel = functools.partial(
        _indrnn_kernel,
        t_chunk=t_chunk,
        unroll=unroll,
        carry_in_vregs=carry_in_vregs,
    )

    out_flat = pl.pallas_call(
        kernel,
        out_shape=jax.ShapeDtypeStruct((T_pad, BH), x.dtype),
        grid_spec=pltpu.PrefetchScalarGridSpec(
            num_scalar_prefetch=0,
            grid=(b_blocks, n_chunks),             # batch blocks outer, time inner
            in_specs=[
                pl.BlockSpec((t_chunk, bh_tile), lambda b, t: (t, b)),  # x chunk
                pl.BlockSpec((1, bh_tile), lambda b, t: (0, b)),        # weight (tiled)
                pl.BlockSpec((1, bh_tile), lambda b, t: (0, b)),        # h0
            ],
            out_specs=pl.BlockSpec((t_chunk, bh_tile), lambda b, t: (t, b)),
            scratch_shapes=[pltpu.VMEM((1, bh_tile), jnp.float32)],     # carried h
        ),
        compiler_params=pltpu.CompilerParams(
            # batch blocks are independent; time is a sequential recurrence
            dimension_semantics=("parallel", "arbitrary"),
            vmem_limit_bytes=32 * 1024 * 1024,
        ),
    )(x_flat, whh_flat, h0_flat)

    return out_flat[:T].reshape(T, B, H)


def indrnn_reference(x, weight_hh, h0=None):
    """Pure-JAX reference (same semantics as indrnn_cpp.forward with relu)."""
    T, B, H = x.shape
    if h0 is None:
        h0 = jnp.zeros((B, H), dtype=x.dtype)

    def step(h_prev, x_t):
        h = jnp.maximum(x_t + weight_hh[None, :].astype(jnp.float32)
                        * h_prev.astype(jnp.float32), 0.0).astype(x.dtype)
        return h, h

    _, hs = jax.lax.scan(step, h0, x)
    return hs


if __name__ == "__main__":
    key = jax.random.PRNGKey(0)
    k_x, k_w, k_h0, k_x2, k_x3, k_h03 = jax.random.split(key, 6)

    # --- test 1: module-default small shapes (single time chunk, lane-dense) --
    seq_len, batch, hidden = 8, 4, 32
    x = jax.random.normal(k_x, (seq_len, batch, hidden), dtype=jnp.float32)
    # reset_parameters(): uniform_(a=0, b=1) on weight_hh of shape (hidden,)
    weight_hh = jax.random.uniform(k_w, (hidden,), dtype=jnp.float32,
                                   minval=0.0, maxval=1.0)
    h0 = jax.random.normal(k_h0, (batch, hidden), dtype=jnp.float32)

    out = jax.block_until_ready(indrnn_pallas(x, weight_hh, h0))
    ref = indrnn_reference(x, weight_hh, h0)
    assert out.shape == (seq_len, batch, hidden)
    assert jnp.allclose(out, ref, atol=1e-5, rtol=1e-5), "mismatch vs reference"

    # h0=None (zeros) default path
    out0 = jax.block_until_ready(indrnn_pallas(x, weight_hh, None))
    ref0 = indrnn_reference(x, weight_hh, None)
    assert jnp.allclose(out0, ref0, atol=1e-5, rtol=1e-5), "mismatch (h0=None)"

    # --- test 2: multi-chunk time axis with padding (T not divisible) --------
    x2 = jax.random.normal(k_x2, (37, batch, hidden), dtype=jnp.float32)
    out2 = jax.block_until_ready(indrnn_pallas(x2, weight_hh, h0, t_chunk=8))
    ref2 = indrnn_reference(x2, weight_hh, h0)
    assert jnp.allclose(out2, ref2, atol=1e-5, rtol=1e-5), "mismatch (chunked)"

    # --- test 3: batch-block parallel axis (v7x megacore path) ---------------
    hidden3 = 64  # (B/2)*H = 128 -> lane-dense batch tiles
    x3 = jax.random.normal(k_x3, (16, batch, hidden3), dtype=jnp.float32)
    w3 = jax.random.uniform(k_w, (hidden3,), dtype=jnp.float32, minval=0.0, maxval=1.0)
    h03 = jax.random.normal(k_h03, (batch, hidden3), dtype=jnp.float32)
    out3 = jax.block_until_ready(
        indrnn_pallas(x3, w3, h03, t_chunk=8, b_blocks=2))
    ref3 = indrnn_reference(x3, w3, h03)
    assert jnp.allclose(out3, ref3, atol=1e-5, rtol=1e-5), "mismatch (b_blocks=2)"

    # TODO(synk): SequenceCat (ragged concatenated sequences) path of the
    # PyTorch module is not implemented; only the dense (T, B, H) tensor path.
    print("KERNEL_OK")
</pallas_src>

<mosaic_0001>
module attributes {stable_mosaic.version = 11 : i64} {
  func.func @_indrnn_kernel(%arg0: i32, %arg1: i32, %arg2: memref<8x128xf32, #tpu.memory_space<vmem>>, %arg3: memref<1x128xf32, #tpu.memory_space<vmem>>, %arg4: memref<1x128xf32, #tpu.memory_space<vmem>>, %arg5: memref<8x128xf32, #tpu.memory_space<vmem>>, %arg6: memref<1x128xf32, #tpu.memory_space<vmem>>) attributes {dimension_semantics = [#tpu.dimension_semantics<parallel>, #tpu.dimension_semantics<arbitrary>], iteration_bounds = array<i64: 1, 1>, scalar_prefetch = 0 : i64, scratch_operands = 1 : i64, tpu.core_type = #tpu.core_type<tc>, window_params = [{transform_indices = @transform_0, window_bounds = array<i64: 8, 128>}, {transform_indices = @transform_1, window_bounds = array<i64: 1, 128>}, {transform_indices = @transform_2, window_bounds = array<i64: 1, 128>}, {transform_indices = @transform_3, window_bounds = array<i64: 8, 128>}]} {
    %c0_i32 = arith.constant 0 : i32
    %0 = arith.cmpi eq, %arg1, %c0_i32 : i32
    %1 = arith.extui %0 : i1 to i32
    %c0_i32_0 = arith.constant 0 : i32
    %2 = arith.cmpi ne, %1, %c0_i32_0 : i32
    scf.if %2 {
      %c0_30 = arith.constant 0 : index
      %c0_31 = arith.constant 0 : index
      %70 = vector.load %arg4[%c0_30, %c0_31] : memref<1x128xf32, #tpu.memory_space<vmem>>, vector<1x128xf32>
      %c0_32 = arith.constant 0 : index
      %c0_33 = arith.constant 0 : index
      %71 = vector.load %arg6[%c0_32, %c0_33] : memref<1x128xf32, #tpu.memory_space<vmem>>, vector<1x128xf32>
      tpu.vector_store %arg6[%c0_32, %c0_33], %70 {strides = array<i32>} : memref<1x128xf32, #tpu.memory_space<vmem>>, vector<1x128xf32>,
    } else {
    }
    %c0 = arith.constant 0 : index
    %c0_1 = arith.constant 0 : index
    %3 = vector.load %arg3[%c0, %c0_1] : memref<1x128xf32, #tpu.memory_space<vmem>>, vector<1x128xf32>
    %c0_2 = arith.constant 0 : index
    %c0_3 = arith.constant 0 : index
    %4 = vector.load %arg6[%c0_2, %c0_3] : memref<1x128xf32, #tpu.memory_space<vmem>>, vector<1x128xf32>
    %c0_i32_4 = arith.constant 0 : i32
    %5 = arith.index_cast %c0_i32_4 : i32 to index
    %c0_5 = arith.constant 0 : index
    %6 = vector.load %arg2[%5, %c0_5] : memref<8x128xf32, #tpu.memory_space<vmem>>, vector<1x128xf32>
    %7 = arith.mulf %3, %4 : vector<1x128xf32>
    %8 = arith.addf %6, %7 : vector<1x128xf32>
    %cst = arith.constant 0.000000e+00 : f32
    %9 = vector.broadcast %cst : f32 to vector<1x128xf32>
    %10 = arith.maximumf %8, %9 : vector<1x128xf32>
    %11 = arith.index_cast %c0_i32_4 : i32 to index
    %c0_6 = arith.constant 0 : index
    %12 = vector.load %arg5[%11, %c0_6] : memref<8x128xf32, #tpu.memory_space<vmem>>, vector<1x128xf32>
    tpu.vector_store %arg5[%11, %c0_6], %10 {strides = array<i32>} : memref<8x128xf32, #tpu.memory_space<vmem>>, vector<1x128xf32>,
    %c1_i32 = arith.constant 1 : i32
    %13 = arith.index_cast %c1_i32 : i32 to index
    %c0_7 = arith.constant 0 : index
    %14 = vector.load %arg2[%13, %c0_7] : memref<8x128xf32, #tpu.memory_space<vmem>>, vector<1x128xf32>
    %15 = arith.mulf %3, %10 : vector<1x128xf32>
    %16 = arith.addf %14, %15 : vector<1x128xf32>
    %cst_8 = arith.constant 0.000000e+00 : f32
    %17 = vector.broadcast %cst_8 : f32 to vector<1x128xf32>
    %18 = arith.maximumf %16, %17 : vector<1x128xf32>
    %19 = arith.index_cast %c1_i32 : i32 to index
    %c0_9 = arith.constant 0 : index
    %20 = vector.load %arg5[%19, %c0_9] : memref<8x128xf32, #tpu.memory_space<vmem>>, vector<1x128xf32>
    tpu.vector_store %arg5[%19, %c0_9], %18 {strides = array<i32>} : memref<8x128xf32, #tpu.memory_space<vmem>>, vector<1x128xf32>,
    %c2_i32 = arith.constant 2 : i32
    %21 = arith.index_cast %c2_i32 : i32 to index
    %c0_10 = arith.constant 0 : index
    %22 = vector.load %arg2[%21, %c0_10] : memref<8x128xf32, #tpu.memory_space<vmem>>, vector<1x128xf32>
    %23 = arith.mulf %3, %18 : vector<1x128xf32>
    %24 = arith.addf %22, %23 : vector<1x128xf32>
    %cst_11 = arith.constant 0.000000e+00 : f32
    %25 = vector.broadcast %cst_11 : f32 to vector<1x128xf32>
    %26 = arith.maximumf %24, %25 : vector<1x128xf32>
    %27 = arith.index_cast %c2_i32 : i32 to index
    %c0_12 = arith.constant 0 : index
    %28 = vector.load %arg5[%27, %c0_12] : memref<8x128xf32, #tpu.memory_space<vmem>>, vector<1x128xf32>
    tpu.vector_store %arg5[%27, %c0_12], %26 {strides = array<i32>} : memref<8x128xf32, #tpu.memory_space<vmem>>, vector<1x128xf32>,
    %c3_i32 = arith.constant 3 : i32
    %29 = arith.index_cast %c3_i32 : i32 to index
    %c0_13 = arith.constant 0 : index
    %30 = vector.load %arg2[%29, %c0_13] : memref<8x128xf32, #tpu.memory_space<vmem>>, vector<1x128xf32>
    %31 = arith.mulf %3, %26 : vector<1x128xf32>
    %32 = arith.addf %30, %31 : vector<1x128xf32>
    %cst_14 = arith.constant 0.000000e+00 : f32
    %33 = vector.broadcast %cst_14 : f32 to vector<1x128xf32>
    %34 = arith.maximumf %32, %33 : vector<1x128xf32>
    %35 = arith.index_cast %c3_i32 : i32 to index
    %c0_15 = arith.constant 0 : index
    %36 = vector.load %arg5[%35, %c0_15] : memref<8x128xf32, #tpu.memory_space<vmem>>, vector<1x128xf32>
    tpu.vector_store %arg5[%35, %c0_15], %34 {strides = array<i32>} : memref<8x128xf32, #tpu.memory_space<vmem>>, vector<1x128xf32>,
    %c4_i32 = arith.constant 4 : i32
    %37 = arith.index_cast %c4_i32 : i32 to index
    %c0_16 = arith.constant 0 : index
    %38 = vector.load %arg2[%37, %c0_16] : memref<8x128xf32, #tpu.memory_space<vmem>>, vector<1x128xf32>
    %39 = arith.mulf %3, %34 : vector<1x128xf32>
    %40 = arith.addf %38, %39 : vector<1x128xf32>
    %cst_17 = arith.constant 0.000000e+00 : f32
    %41 = vector.broadcast %cst_17 : f32 to vector<1x128xf32>
    %42 = arith.maximumf %40, %41 : vector<1x128xf32>
    %43 = arith.index_cast %c4_i32 : i32 to index
    %c0_18 = arith.constant 0 : index
    %44 = vector.load %arg5[%43, %c0_18] : memref<8x128xf32, #tpu.memory_space<vmem>>, vector<1x128xf32>
    tpu.vector_store %arg5[%43, %c0_18], %42 {strides = array<i32>} : memref<8x128xf32, #tpu.memory_space<vmem>>, vector<1x128xf32>,
    %c5_i32 = arith.constant 5 : i32
    %45 = arith.index_cast %c5_i32 : i32 to index
    %c0_19 = arith.constant 0 : index
    %46 = vector.load %arg2[%45, %c0_19] : memref<8x128xf32, #tpu.memory_space<vmem>>, vector<1x128xf32>
    %47 = arith.mulf %3, %42 : vector<1x128xf32>
    %48 = arith.addf %46, %47 : vector<1x128xf32>
    %cst_20 = arith.constant 0.000000e+00 : f32
    %49 = vector.broadcast %cst_20 : f32 to vector<1x128xf32>
    %50 = arith.maximumf %48, %49 : vector<1x128xf32>
    %51 = arith.index_cast %c5_i32 : i32 to index
    %c0_21 = arith.constant 0 : index
    %52 = vector.load %arg5[%51, %c0_21] : memref<8x128xf32, #tpu.memory_space<vmem>>, vector<1x128xf32>
    tpu.vector_store %arg5[%51, %c0_21], %50 {strides = array<i32>} : memref<8x128xf32, #tpu.memory_space<vmem>>, vector<1x128xf32>,
    %c6_i32 = arith.constant 6 : i32
    %53 = arith.index_cast %c6_i32 : i32 to index
    %c0_22 = arith.constant 0 : index
    %54 = vector.load %arg2[%53, %c0_22] : memref<8x128xf32, #tpu.memory_space<vmem>>, vector<1x128xf32>
    %55 = arith.mulf %3, %50 : vector<1x128xf32>
    %56 = arith.addf %54, %55 : vector<1x128xf32>
    %cst_23 = arith.constant 0.000000e+00 : f32
    %57 = vector.broadcast %cst_23 : f32 to vector<1x128xf32>
    %58 = arith.maximumf %56, %57 : vector<1x128xf32>
    %59 = arith.index_cast %c6_i32 : i32 to index
    %c0_24 = arith.constant 0 : index
    %60 = vector.load %arg5[%59, %c0_24] : memref<8x128xf32, #tpu.memory_space<vmem>>, vector<1x128xf32>
    tpu.vector_store %arg5[%59, %c0_24], %58 {strides = array<i32>} : memref<8x128xf32, #tpu.memory_space<vmem>>, vector<1x128xf32>,
    %c7_i32 = arith.constant 7 : i32
    %61 = arith.index_cast %c7_i32 : i32 to index
    %c0_25 = arith.constant 0 : index
    %62 = vector.load %arg2[%61, %c0_25] : memref<8x128xf32, #tpu.memory_space<vmem>>, vector<1x128xf32>
    %63 = arith.mulf %3, %58 : vector<1x128xf32>
    %64 = arith.addf %62, %63 : vector<1x128xf32>
    %cst_26 = arith.constant 0.000000e+00 : f32
    %65 = vector.broadcast %cst_26 : f32 to vector<1x128xf32>
    %66 = arith.maximumf %64, %65 : vector<1x128xf32>
    %67 = arith.index_cast %c7_i32 : i32 to index
    %c0_27 = arith.constant 0 : index
    %68 = vector.load %arg5[%67, %c0_27] : memref<8x128xf32, #tpu.memory_space<vmem>>, vector<1x128xf32>
    tpu.vector_store %arg5[%67, %c0_27], %66 {strides = array<i32>} : memref<8x128xf32, #tpu.memory_space<vmem>>, vector<1x128xf32>,
    %c8_i32 = arith.constant 8 : i32
    %c0_28 = arith.constant 0 : index
    %c0_29 = arith.constant 0 : index
    %69 = vector.load %arg6[%c0_28, %c0_29] : memref<1x128xf32, #tpu.memory_space<vmem>>, vector<1x128xf32>
    tpu.vector_store %arg6[%c0_28, %c0_29], %66 {strides = array<i32>} : memref<1x128xf32, #tpu.memory_space<vmem>>, vector<1x128xf32>,
    return
  }
  func.func @transform_0(%arg0: i32, %arg1: i32) -> (i32, i32) {
    %c0_i32 = arith.constant 0 : i32
    return %arg1, %arg0 : i32, i32
  }
  func.func @transform_1(%arg0: i32, %arg1: i32) -> (i32, i32) {
    %c0_i32 = arith.constant 0 : i32
    %c0_i32_0 = arith.constant 0 : i32
    return %c0_i32, %arg0 : i32, i32
  }
  func.func @transform_2(%arg0: i32, %arg1: i32) -> (i32, i32) {
    %c0_i32 = arith.constant 0 : i32
    %c0_i32_0 = arith.constant 0 : i32
    return %c0_i32, %arg0 : i32, i32
  }
  func.func @transform_3(%arg0: i32, %arg1: i32) -> (i32, i32) {
    %c0_i32 = arith.constant 0 : i32
    return %arg1, %arg0 : i32, i32
  }
}

</mosaic_0001>

<llo_original>
// kernel: tpu_custom_call.1
$region0: #{tpu_custom_call.1}
  #allocation0 [shape = 'u32[]', space=smem, size = 0x4, offset = 0x4, fixed_abs, tag = 'smem constant byte address 0x4 - core index']
  #allocation1 [shape = 'u32[144,128]{1,0:T(1,128)}', space=vmem, size = 0x12000, scoped, tag = 'internal scratch']
  #allocation2 [shape = 'f32[1,128]{1,0:T(1,128)}', space=vmem, size = 0x200, scoped, tag = 'scratch operand']
  %s0 = inlined_call_operand.hbm [shape: f32[8,128], index: 0, kind: input, shape index: {}]
  %s1 = inlined_call_operand.vmem [shape: f32[1,128], index: 1, kind: input, shape index: {}]
  %s2 = inlined_call_operand.vmem [shape: f32[1,128], index: 2, kind: input, shape index: {}]
  %s3 = inlined_call_operand.hbm [shape: f32[8,128], index: 3, kind: output, shape index: {}]
  %s4 = sld [smem:[#allocation0]]
  $region30: #{tpu_custom_call.1} parent=0
    _
  %s6 = ssub.s32 1, %s4
  %s7 = scalar_select 0, %s6, %s4
  $region1: #{tpu_custom_call.1} parent=0
    #allocation3 [shape = 'u8[4096]{0}', space=vmem, size = 0x1000, scoped, tag = 'input window, operand 0, single buffered']
    #allocation4 [shape = 's32[1]{0}', space=sflag, size = 0x4, scoped, tag = 'scoped memory for tpu_custom_call.1']
    #allocation5 [shape = 's32[1]{0}', space=sflag, size = 0x4, scoped, tag = 'scoped memory for tpu_custom_call.1']
    #allocation6 [shape = 'u8[4096]{0}', space=vmem, size = 0x1000, scoped, tag = 'output window, operand 0, single buffered']
    %8 = vsyncpa [#allocation4], 0
    %9 = vsyncpa [#allocation5], 0
    // Predicated region
    $region2: #{tpu_custom_call.1} parent=1 // pred_check
      _
    $region3: #{tpu_custom_call.1} parent=1 // pred_check_branch
      %11 = sbr.rel (0) target = $region5
    $region4: #{tpu_custom_call.1} parent=1 // pred_region
      %s13 = ssub.s32 128, 128
      %14 = vsyncadd [#allocation4], %s13
      %s16 = sshll.u32 [#allocation3], 4
      %s17 = int_to_ptr.vmem [resolvable:$true] %s16
      %19 = dma.hbm_to_vmem [thread:$0]  %s0, 128, %s17, [#allocation4]
    $region5: #{tpu_custom_call.1} parent=1 // pred_fallthru
      _
    // Predicated region
    $region6: #{tpu_custom_call.1} parent=1 // pred_check
      _
    $region7: #{tpu_custom_call.1} parent=1 // pred_check_branch
      %21 = sbr.rel (0) target = $region9
    $region8: #{tpu_custom_call.1} parent=1 // pred_region
      _
    $region9: #{tpu_custom_call.1} parent=1 // pred_fallthru
      _
    // Predicated region
    $region10: #{tpu_custom_call.1} parent=1 // pred_check
      _
    $region11: #{tpu_custom_call.1} parent=1 // pred_check_branch
      %23 = sbr.rel (0) target = $region13
    $region12: #{tpu_custom_call.1} parent=1 // pred_region
      _
    $region13: #{tpu_custom_call.1} parent=1 // pred_fallthru
      _
    // Predicated region
    $region14: #{tpu_custom_call.1} parent=1 // pred_check
      _
    $region15: #{tpu_custom_call.1} parent=1 // pred_check_branch
      %25 = sbr.rel (0) target = $region17
    $region16: #{tpu_custom_call.1} parent=1 // pred_region
      %26 = dma.done [#allocation4], 128
    $region17: #{tpu_custom_call.1} parent=1 // pred_fallthru
      _
    %p27 = scmp.eq.s32.totalorder 0, 0
    // Predicated region
    $region18: #{tpu_custom_call.1} parent=1 // pred_check
      %p28 = pneg %p27
    $region19: #{tpu_custom_call.1} parent=1 // pred_check_branch
      %30 = sbr.rel (%p28) target = $region21
    $region20: #{tpu_custom_call.1} parent=1 // pred_region
      %v31 = vld [vmem:[%s2] sm:$0x1]
      %32 = vst [vmem:[#allocation2] sm:$0x1] %v31
    $region21: #{tpu_custom_call.1} parent=1 // pred_fallthru
      _
    %v33 = vld [vmem:[%s1] sm:$0x1]
    %v34 = vld [vmem:[#allocation2] sm:$0x1]
    %v35 = vld [vmem:[#allocation3] sm:$0x1]
    %v36 = vmul.f32 %v33, %v34
    %v37 = vadd.f32 %v35, %v36
    %v38 = vmax.f32 %v37, 0.0
    %39 = vst [vmem:[#allocation6] sm:$0x1] %v38
    %v40 = vld [vmem:[#allocation3 + $0x1] sm:$0x1]
    %v41 = vmul.f32 %v33, %v38
    %v42 = vadd.f32 %v40, %v41
    %v43 = vmax.f32 %v42, 0.0
    %44 = vst [vmem:[#allocation6 + $0x1] sm:$0x1] %v43
    %v45 = vld [vmem:[#allocation3 + $0x2] sm:$0x1]
    %v46 = vmul.f32 %v33, %v43
    %v47 = vadd.f32 %v45, %v46
    %v48 = vmax.f32 %v47, 0.0
    %49 = vst [vmem:[#allocation6 + $0x2] sm:$0x1] %v48
    %v50 = vld [vmem:[#allocation3 + $0x3] sm:$0x1]
    %v51 = vmul.f32 %v33, %v48
    %v52 = vadd.f32 %v50, %v51
    %v53 = vmax.f32 %v52, 0.0
    %54 = vst [vmem:[#allocation6 + $0x3] sm:$0x1] %v53
    %v55 = vld [vmem:[#allocation3 + $0x4] sm:$0x1]
    %v56 = vmul.f32 %v33, %v53
    %v57 = vadd.f32 %v55, %v56
    %v58 = vmax.f32 %v57, 0.0
    %59 = vst [vmem:[#allocation6 + $0x4] sm:$0x1] %v58
    %v60 = vld [vmem:[#allocation3 + $0x5] sm:$0x1]
    %v61 = vmul.f32 %v33, %v58
    %v62 = vadd.f32 %v60, %v61
    %v63 = vmax.f32 %v62, 0.0
    %64 = vst [vmem:[#allocation6 + $0x5] sm:$0x1] %v63
    %v65 = vld [vmem:[#allocation3 + $0x6] sm:$0x1]
    %v66 = vmul.f32 %v33, %v63
    %v67 = vadd.f32 %v65, %v66
    %v68 = vmax.f32 %v67, 0.0
    %69 = vst [vmem:[#allocation6 + $0x6] sm:$0x1] %v68
    %v70 = vld [vmem:[#allocation3 + $0x7] sm:$0x1]
    %v71 = vmul.f32 %v33, %v68
    %v72 = vadd.f32 %v70, %v71
    %v73 = vmax.f32 %v72, 0.0
    %74 = vst [vmem:[#allocation6 + $0x7] sm:$0x1] %v73
    %75 = vst [vmem:[#allocation2] sm:$0x1] %v73
    // Predicated region
    $region22: #{tpu_custom_call.1} parent=1 // pred_check
      _
    $region23: #{tpu_custom_call.1} parent=1 // pred_check_branch
      %77 = sbr.rel (0) target = $region25
    $region24: #{tpu_custom_call.1} parent=1 // pred_region
      %s79 = ssub.s32 128, 128
      %80 = vsyncadd [#allocation5], %s79
      %s82 = sshll.u32 [#allocation6], 4
      %s83 = int_to_ptr.vmem [resolvable:$true] %s82
      %85 = dma.vmem_to_hbm [thread:$0]  %s83, 128, %s3, [#allocation5]
    $region25: #{tpu_custom_call.1} parent=1 // pred_fallthru
      _
    // Predicated region
    $region26: #{tpu_custom_call.1} parent=1 // pred_check
      _
    $region27: #{tpu_custom_call.1} parent=1 // pred_check_branch
      %87 = sbr.rel (0) target = $region29
    $region28: #{tpu_custom_call.1} parent=1 // pred_region
      %88 = dma.done [#allocation5], 128
    $region29: #{tpu_custom_call.1} parent=1 // pred_fallthru
      _
    %89 = vsyncpa [#allocation4], 1
    %90 = vsyncpa [#allocation5], 1

</llo_original>
